<compile_context>
chip_gen: v5e
topology: v5e:2x2
jax: 0.10.0
libtpu: 0.0.40
codegen_flags: <defaults>
</compile_context>

<pallas_src>
import functools

import jax
import jax.numpy as jnp
import numpy as np
from jax.experimental import pallas as pl
from jax.experimental.pallas import tpu as pltpu


def _layer_norm(x, gamma, beta, eps=1e-5):
    mu = jnp.mean(x, axis=-1, keepdims=True)
    var = jnp.mean((x - mu) ** 2, axis=-1, keepdims=True)
    return (x - mu) * jax.lax.rsqrt(var + eps) * gamma + beta


def _gelu_tanh(x):
    # TODO(synk): PyTorch nn.GELU() defaults to the exact erf form; erf has no clean
    # Mosaic lowering, so the tanh approximation is used (abs err ~1e-3 worst case).
    c = np.float32(np.sqrt(2.0 / np.pi))
    return 0.5 * x * (1.0 + jnp.tanh(c * (x + np.float32(0.044715) * x * x * x)))


def _fast_recip(x):
    # EUP approximate reciprocal + one Newton refinement step -> ~f32 accuracy,
    # moves the divide off the VPU path.
    r = pl.reciprocal(x, approx=True)
    return r * (2.0 - x * r)


def _encoder_layer_kernel(b_tile, q_len, n_heads, d_k, d_v,
                          src_ref, wqkv_ref, wo_ref, w1_ref, b1_ref, w2_ref,
                          vecs_ref, out_ref):
    d_model = src_ref.shape[-1]
    rows = b_tile * q_len

    # packed small vectors: rows = [b2, ln1_g, ln1_b, ln2_g, ln2_b]
    b2 = vecs_ref[0:1, :]
    g1 = vecs_ref[1:2, :]
    be1 = vecs_ref[2:3, :]
    g2 = vecs_ref[3:4, :]
    be2 = vecs_ref[4:5, :]

    # leading-dim flatten (lane dim unchanged -> no relayout)
    x = src_ref[...].reshape(rows, d_model)

    # --- fused QKV projection: one tall MXU matmul -----------------------------
    qkv = jnp.dot(x, wqkv_ref[...], preferred_element_type=jnp.float32)
    qkv3 = qkv.reshape(b_tile, q_len, qkv.shape[-1])      # leading-dim split

    hdk = n_heads * d_k
    scale = np.float32(1.0 / (d_k ** 0.5))

    # --- multi-head self attention, batched over B_TILE ------------------------
    attn_out = jnp.zeros((rows, d_model), jnp.float32)
    for h in range(n_heads):                               # static unroll over heads
        qh = qkv3[:, :, h * d_k:(h + 1) * d_k]                       # (B, q, dk)
        kh = qkv3[:, :, hdk + h * d_k: hdk + (h + 1) * d_k]          # (B, q, dk)
        vh = qkv3[:, :, 2 * hdk + h * d_v: 2 * hdk + (h + 1) * d_v]  # (B, q, dv)

        s = jnp.einsum('bqd,bkd->bqk', qh, kh,
                       preferred_element_type=jnp.float32) * scale
        s = s - jnp.max(s, axis=-1, keepdims=True)         # stable softmax
        e = jnp.exp(s)
        inv_l = _fast_recip(jnp.sum(e, axis=-1, keepdims=True))
        ctx_h = jnp.einsum('bqk,bkd->bqd', e, vh,
                           preferred_element_type=jnp.float32) * inv_l

        # accumulate straight into the output projection (no concat / relayout)
        attn_out = attn_out + jnp.dot(ctx_h.reshape(rows, d_v),
                                      wo_ref[h * d_v:(h + 1) * d_v, :],
                                      preferred_element_type=jnp.float32)

    # residual + LayerNorm  (dropout is identity in eval mode)
    y1 = _layer_norm(x + attn_out, g1, be1)

    # --- feed-forward -----------------------------------------------------------
    hdn = jnp.dot(y1, w1_ref[...], preferred_element_type=jnp.float32) + b1_ref[...]
    hdn = _gelu_tanh(hdn)
    ff = jnp.dot(hdn, w2_ref[...], preferred_element_type=jnp.float32) + b2

    out = _layer_norm(y1 + ff, g2, be2)
    out_ref[...] = out.reshape(b_tile, q_len, d_model)


def tab_encoder_layer(src, params, n_heads, d_k, d_v, b_tile=None):
    bs, q_len, d_model = src.shape
    d_ff = params["w1_t"].shape[1]

    # fuse Q/K/V weights into a single matmul operand
    wqkv = jnp.concatenate([params["wq_t"], params["wk_t"], params["wv_t"]], axis=1)
    # pack the small (1, d_model) vectors into one array (one DMA instead of five)
    vecs = jnp.concatenate([params["b2"], params["ln1_g"], params["ln1_b"],
                            params["ln2_g"], params["ln2_b"]], axis=0)

    if b_tile is None:
        # Target ~2K rows per grid step so the big matmuls are tall MXU shapes while
        # the per-step live state (a few MB at d_model=32/d_ff=128) stays far below
        # the default scoped-VMEM limit on every generation (incl. v7x's 64 MiB).
        b_tile = max(1, min(bs, 2048 // max(1, q_len)))
    n_tiles = pl.cdiv(bs, b_tile)
    bs_pad = n_tiles * b_tile
    if bs_pad != bs:
        src = jnp.pad(src, ((0, bs_pad - bs), (0, 0), (0, 0)))

    kernel = functools.partial(_encoder_layer_kernel, b_tile, q_len, n_heads, d_k, d_v)

    def full(shape):
        return pl.BlockSpec(shape, lambda b, _n=len(shape): (0,) * _n)

    d_qkv = wqkv.shape[1]
    grid_spec = pltpu.PrefetchScalarGridSpec(
        num_scalar_prefetch=0,
        grid=(n_tiles,),
        in_specs=[
            pl.BlockSpec((b_tile, q_len, d_model), lambda b: (b, 0, 0)),  # src tile
            full((d_model, d_qkv)),            # fused [W_Q | W_K | W_V]^T
            full((n_heads * d_v, d_model)),    # W_O^T
            full((d_model, d_ff)),             # FF W1^T
            full((1, d_ff)),                   # FF b1
            full((d_ff, d_model)),             # FF W2^T
            full((5, d_model)),                # packed [b2, ln1_g, ln1_b, ln2_g, ln2_b]
        ],
        out_specs=pl.BlockSpec((b_tile, q_len, d_model), lambda b: (b, 0, 0)),
    )

    # advisory cost estimate for XLA's scheduler
    flops = (2 * bs_pad * q_len * d_model * (d_qkv + n_heads * d_v)
             + 2 * bs_pad * n_heads * q_len * q_len * (d_k + d_v)
             + 4 * bs_pad * q_len * d_model * d_ff)
    transcendentals = bs_pad * q_len * (d_ff + n_heads * q_len)
    n_weight_elems = (d_model * d_qkv + n_heads * d_v * d_model
                      + d_model * d_ff + d_ff + d_ff * d_model + 6 * d_model)
    bytes_accessed = 4 * (2 * bs_pad * q_len * d_model + n_weight_elems)

    out = pl.pallas_call(
        kernel,
        out_shape=jax.ShapeDtypeStruct((bs_pad, q_len, d_model), jnp.float32),
        grid_spec=grid_spec,
        compiler_params=pltpu.CompilerParams(dimension_semantics=("parallel",)),
        cost_estimate=pl.CostEstimate(flops=flops,
                                      transcendentals=transcendentals,
                                      bytes_accessed=bytes_accessed),
    )(src, wqkv, params["wo_t"], params["w1_t"], params["b1"], params["w2_t"], vecs)

    return out[:bs] if bs_pad != bs else out


# ----------------------------- pure-JAX reference -------------------------------
def reference(src, params, n_heads, d_k, d_v):
    bs, q_len, d_model = src.shape
    q = src @ params["wq_t"]
    k = src @ params["wk_t"]
    v = src @ params["wv_t"]
    q = q.reshape(bs, q_len, n_heads, d_k).transpose(0, 2, 1, 3)   # (bs,H,q,dk)
    k = k.reshape(bs, q_len, n_heads, d_k).transpose(0, 2, 3, 1)   # (bs,H,dk,q)
    v = v.reshape(bs, q_len, n_heads, d_v).transpose(0, 2, 1, 3)   # (bs,H,q,dv)
    scores = jnp.einsum("bhqd,bhdk->bhqk", q, k) / (d_k ** 0.5)
    attn = jax.nn.softmax(scores, axis=-1)
    ctx = jnp.einsum("bhqk,bhkd->bhqd", attn, v)
    ctx = ctx.transpose(0, 2, 1, 3).reshape(bs, q_len, n_heads * d_v)
    attn_out = ctx @ params["wo_t"]
    y1 = _layer_norm(src + attn_out, params["ln1_g"][0], params["ln1_b"][0])
    h = _gelu_tanh(y1 @ params["w1_t"] + params["b1"][0])
    ff = h @ params["w2_t"] + params["b2"][0]
    return _layer_norm(y1 + ff, params["ln2_g"][0], params["ln2_b"][0])


if __name__ == "__main__":
    # small shapes consistent with _TabEncoderLayer defaults
    q_len, d_model, n_heads = 8, 32, 4
    d_k = d_v = d_model // n_heads          # 8
    d_ff = d_model * 4                      # 128

    key = jax.random.PRNGKey(0)
    ks = jax.random.split(key, 10)
    f32 = jnp.float32
    params = {
        "wq_t": 0.05 * jax.random.normal(ks[0], (d_model, n_heads * d_k), f32),
        "wk_t": 0.05 * jax.random.normal(ks[1], (d_model, n_heads * d_k), f32),
        "wv_t": 0.05 * jax.random.normal(ks[2], (d_model, n_heads * d_v), f32),
        "wo_t": 0.05 * jax.random.normal(ks[3], (n_heads * d_v, d_model), f32),
        "w1_t": 0.05 * jax.random.normal(ks[4], (d_model, d_ff), f32),
        "b1":   0.05 * jax.random.normal(ks[5], (1, d_ff), f32),
        "w2_t": 0.05 * jax.random.normal(ks[6], (d_ff, d_model), f32),
        "b2":   0.05 * jax.random.normal(ks[7], (1, d_model), f32),
        "ln1_g": jnp.ones((1, d_model), f32),
        "ln1_b": jnp.zeros((1, d_model), f32),
        "ln2_g": jnp.ones((1, d_model), f32),
        "ln2_b": jnp.zeros((1, d_model), f32),
    }

    # --- main small test (batch=2) ---------------------------------------------
    src = jax.random.normal(ks[8], (2, q_len, d_model), f32)
    out = jax.block_until_ready(tab_encoder_layer(src, params, n_heads, d_k, d_v))
    ref = reference(src, params, n_heads, d_k, d_v)
    np.testing.assert_allclose(np.asarray(out), np.asarray(ref), atol=1e-4, rtol=1e-4)

    # --- exercise the batch-tiled / padded path (bs=5, b_tile=2 -> 3 grid steps) -
    src5 = jax.random.normal(ks[9], (5, q_len, d_model), f32)
    out5 = jax.block_until_ready(
        tab_encoder_layer(src5, params, n_heads, d_k, d_v, b_tile=2))
    ref5 = reference(src5, params, n_heads, d_k, d_v)
    np.testing.assert_allclose(np.asarray(out5), np.asarray(ref5), atol=1e-4, rtol=1e-4)

    print("KERNEL_OK")
</pallas_src>

<mosaic_0001>
module attributes {stable_mosaic.version = 11 : i64} {
  func.func @_encoder_layer_kernel(%arg0: i32, %arg1: memref<2x8x32xf32, #tpu.memory_space<vmem>>, %arg2: memref<32x96xf32, #tpu.memory_space<vmem>>, %arg3: memref<32x32xf32, #tpu.memory_space<vmem>>, %arg4: memref<32x128xf32, #tpu.memory_space<vmem>>, %arg5: memref<1x128xf32, #tpu.memory_space<vmem>>, %arg6: memref<128x32xf32, #tpu.memory_space<vmem>>, %arg7: memref<5x32xf32, #tpu.memory_space<vmem>>, %arg8: memref<2x8x32xf32, #tpu.memory_space<vmem>>) attributes {dimension_semantics = [#tpu.dimension_semantics<parallel>], iteration_bounds = array<i64: 1>, scalar_prefetch = 0 : i64, scratch_operands = 0 : i64, tpu.core_type = #tpu.core_type<tc>, window_params = [{transform_indices = @transform_0, window_bounds = array<i64: 2, 8, 32>}, {pipeline_mode = #tpu.pipeline_mode<synchronous>, transform_indices = @transform_1, window_bounds = array<i64: 32, 96>}, {pipeline_mode = #tpu.pipeline_mode<synchronous>, transform_indices = @transform_2, window_bounds = array<i64: 32, 32>}, {pipeline_mode = #tpu.pipeline_mode<synchronous>, transform_indices = @transform_3, window_bounds = array<i64: 32, 128>}, {pipeline_mode = #tpu.pipeline_mode<synchronous>, transform_indices = @transform_4, window_bounds = array<i64: 1, 128>}, {pipeline_mode = #tpu.pipeline_mode<synchronous>, transform_indices = @transform_5, window_bounds = array<i64: 128, 32>}, {pipeline_mode = #tpu.pipeline_mode<synchronous>, transform_indices = @transform_6, window_bounds = array<i64: 5, 32>}, {transform_indices = @transform_7, window_bounds = array<i64: 2, 8, 32>}]} {
    %c0 = arith.constant 0 : index
    %c0_0 = arith.constant 0 : index
    %0 = vector.load %arg7[%c0, %c0_0] : memref<5x32xf32, #tpu.memory_space<vmem>>, vector<1x32xf32>
    %c1 = arith.constant 1 : index
    %c0_1 = arith.constant 0 : index
    %1 = vector.load %arg7[%c1, %c0_1] : memref<5x32xf32, #tpu.memory_space<vmem>>, vector<1x32xf32>
    %c2 = arith.constant 2 : index
    %c0_2 = arith.constant 0 : index
    %2 = vector.load %arg7[%c2, %c0_2] : memref<5x32xf32, #tpu.memory_space<vmem>>, vector<1x32xf32>
    %c3 = arith.constant 3 : index
    %c0_3 = arith.constant 0 : index
    %3 = vector.load %arg7[%c3, %c0_3] : memref<5x32xf32, #tpu.memory_space<vmem>>, vector<1x32xf32>
    %c4 = arith.constant 4 : index
    %c0_4 = arith.constant 0 : index
    %4 = vector.load %arg7[%c4, %c0_4] : memref<5x32xf32, #tpu.memory_space<vmem>>, vector<1x32xf32>
    %c0_5 = arith.constant 0 : index
    %c0_6 = arith.constant 0 : index
    %c0_7 = arith.constant 0 : index
    %5 = vector.load %arg1[%c0_5, %c0_6, %c0_7] : memref<2x8x32xf32, #tpu.memory_space<vmem>>, vector<2x8x32xf32>
    %6 = vector.shape_cast %5 : vector<2x8x32xf32> to vector<16x32xf32>
    %c0_8 = arith.constant 0 : index
    %c0_9 = arith.constant 0 : index
    %7 = vector.load %arg2[%c0_8, %c0_9] : memref<32x96xf32, #tpu.memory_space<vmem>>, vector<32x96xf32>
    %cst = arith.constant dense<0.000000e+00> : vector<16x96xf32>
    %8 = tpu.matmul %6, %7, %cst {dimension_numbers = #tpu.dot_dimension_numbers<[1], [0], [0], [1], [0, 0, 1, 1], [], []>} : vector<16x32xf32>, vector<32x96xf32>, vector<16x96xf32> -> vector<16x96xf32>
    %9 = vector.shape_cast %8 : vector<16x96xf32> to vector<2x8x96xf32>
    %cst_10 = arith.constant 0.000000e+00 : f32
    %10 = vector.broadcast %cst_10 : f32 to vector<16x32xf32>
    %11 = vector.extract_strided_slice %9 {offsets = [0, 0, 0], sizes = [2, 8, 8], strides = [1, 1, 1]} : vector<2x8x96xf32> to vector<2x8x8xf32>
    %12 = vector.extract_strided_slice %9 {offsets = [0, 0, 32], sizes = [2, 8, 8], strides = [1, 1, 1]} : vector<2x8x96xf32> to vector<2x8x8xf32>
    %13 = vector.extract_strided_slice %9 {offsets = [0, 0, 64], sizes = [2, 8, 8], strides = [1, 1, 1]} : vector<2x8x96xf32> to vector<2x8x8xf32>
    "tpu.trace_start"() <{level = 10 : i32, message = "bqd,bkd->bqk"}> : () -> ()
    %cst_11 = arith.constant dense<0.000000e+00> : vector<2x8x8xf32>
    %14 = tpu.matmul %11, %12, %cst_11 {dimension_numbers = #tpu.dot_dimension_numbers<[2], [2], [1], [1], [0, 0, 0, 1, 1, 1], [0], [0]>} : vector<2x8x8xf32>, vector<2x8x8xf32>, vector<2x8x8xf32> -> vector<2x8x8xf32>
    "tpu.trace_stop"() : () -> ()
    %cst_12 = arith.constant 0.353553385 : f32
    %15 = vector.broadcast %cst_12 : f32 to vector<2x8x8xf32>
    %16 = arith.mulf %14, %15 : vector<2x8x8xf32>
    %cst_13 = arith.constant dense<0xFF800000> : vector<2x8xf32>
    %17 = vector.multi_reduction <maximumf>, %16, %cst_13 [2] : vector<2x8x8xf32> to vector<2x8xf32>
    %18 = vector.shape_cast %17 : vector<2x8xf32> to vector<2x8x1xf32>
    %19 = vector.broadcast %18 : vector<2x8x1xf32> to vector<2x8x8xf32>
    %20 = arith.subf %16, %19 : vector<2x8x8xf32>
    %21 = math.exp %20 : vector<2x8x8xf32>
    %cst_14 = arith.constant dense<0.000000e+00> : vector<2x8xf32>
    %22 = vector.multi_reduction <add>, %21, %cst_14 [2] : vector<2x8x8xf32> to vector<2x8xf32>
    %23 = vector.shape_cast %22 : vector<2x8xf32> to vector<2x8x1xf32>
    %24 = tpu.reciprocal %23 {approx = true} : vector<2x8x1xf32> -> vector<2x8x1xf32>
    %25 = arith.mulf %23, %24 : vector<2x8x1xf32>
    %cst_15 = arith.constant 2.000000e+00 : f32
    %26 = vector.broadcast %cst_15 : f32 to vector<2x8x1xf32>
    %27 = arith.subf %26, %25 : vector<2x8x1xf32>
    %28 = arith.mulf %24, %27 : vector<2x8x1xf32>
    "tpu.trace_start"() <{level = 10 : i32, message = "bqk,bkd->bqd"}> : () -> ()
    %cst_16 = arith.constant dense<0.000000e+00> : vector<2x8x8xf32>
    %29 = tpu.matmul %21, %13, %cst_16 {dimension_numbers = #tpu.dot_dimension_numbers<[2], [1], [1], [2], [0, 0, 0, 1, 1, 2], [0], [0]>} : vector<2x8x8xf32>, vector<2x8x8xf32>, vector<2x8x8xf32> -> vector<2x8x8xf32>
    "tpu.trace_stop"() : () -> ()
    %30 = vector.broadcast %28 : vector<2x8x1xf32> to vector<2x8x8xf32>
    %31 = arith.mulf %29, %30 : vector<2x8x8xf32>
    %32 = vector.shape_cast %31 : vector<2x8x8xf32> to vector<16x8xf32>
    %c0_17 = arith.constant 0 : index
    %c0_18 = arith.constant 0 : index
    %33 = vector.load %arg3[%c0_17, %c0_18] : memref<32x32xf32, #tpu.memory_space<vmem>>, vector<8x32xf32>
    %cst_19 = arith.constant dense<0.000000e+00> : vector<16x32xf32>
    %34 = tpu.matmul %32, %33, %cst_19 {dimension_numbers = #tpu.dot_dimension_numbers<[1], [0], [0], [1], [0, 0, 1, 1], [], []>} : vector<16x8xf32>, vector<8x32xf32>, vector<16x32xf32> -> vector<16x32xf32>
    %35 = arith.addf %10, %34 : vector<16x32xf32>
    %36 = vector.extract_strided_slice %9 {offsets = [0, 0, 8], sizes = [2, 8, 8], strides = [1, 1, 1]} : vector<2x8x96xf32> to vector<2x8x8xf32>
    %37 = vector.extract_strided_slice %9 {offsets = [0, 0, 40], sizes = [2, 8, 8], strides = [1, 1, 1]} : vector<2x8x96xf32> to vector<2x8x8xf32>
    %38 = vector.extract_strided_slice %9 {offsets = [0, 0, 72], sizes = [2, 8, 8], strides = [1, 1, 1]} : vector<2x8x96xf32> to vector<2x8x8xf32>
    "tpu.trace_start"() <{level = 10 : i32, message = "bqd,bkd->bqk"}> : () -> ()
    %cst_20 = arith.constant dense<0.000000e+00> : vector<2x8x8xf32>
    %39 = tpu.matmul %36, %37, %cst_20 {dimension_numbers = #tpu.dot_dimension_numbers<[2], [2], [1], [1], [0, 0, 0, 1, 1, 1], [0], [0]>} : vector<2x8x8xf32>, vector<2x8x8xf32>, vector<2x8x8xf32> -> vector<2x8x8xf32>
    "tpu.trace_stop"() : () -> ()
    %cst_21 = arith.constant 0.353553385 : f32
    %40 = vector.broadcast %cst_21 : f32 to vector<2x8x8xf32>
    %41 = arith.mulf %39, %40 : vector<2x8x8xf32>
    %cst_22 = arith.constant dense<0xFF800000> : vector<2x8xf32>
    %42 = vector.multi_reduction <maximumf>, %41, %cst_22 [2] : vector<2x8x8xf32> to vector<2x8xf32>
    %43 = vector.shape_cast %42 : vector<2x8xf32> to vector<2x8x1xf32>
    %44 = vector.broadcast %43 : vector<2x8x1xf32> to vector<2x8x8xf32>
    %45 = arith.subf %41, %44 : vector<2x8x8xf32>
    %46 = math.exp %45 : vector<2x8x8xf32>
    %cst_23 = arith.constant dense<0.000000e+00> : vector<2x8xf32>
    %47 = vector.multi_reduction <add>, %46, %cst_23 [2] : vector<2x8x8xf32> to vector<2x8xf32>
    %48 = vector.shape_cast %47 : vector<2x8xf32> to vector<2x8x1xf32>
    %49 = tpu.reciprocal %48 {approx = true} : vector<2x8x1xf32> -> vector<2x8x1xf32>
    %50 = arith.mulf %48, %49 : vector<2x8x1xf32>
    %cst_24 = arith.constant 2.000000e+00 : f32
    %51 = vector.broadcast %cst_24 : f32 to vector<2x8x1xf32>
    %52 = arith.subf %51, %50 : vector<2x8x1xf32>
    %53 = arith.mulf %49, %52 : vector<2x8x1xf32>
    "tpu.trace_start"() <{level = 10 : i32, message = "bqk,bkd->bqd"}> : () -> ()
    %cst_25 = arith.constant dense<0.000000e+00> : vector<2x8x8xf32>
    %54 = tpu.matmul %46, %38, %cst_25 {dimension_numbers = #tpu.dot_dimension_numbers<[2], [1], [1], [2], [0, 0, 0, 1, 1, 2], [0], [0]>} : vector<2x8x8xf32>, vector<2x8x8xf32>, vector<2x8x8xf32> -> vector<2x8x8xf32>
    "tpu.trace_stop"() : () -> ()
    %55 = vector.broadcast %53 : vector<2x8x1xf32> to vector<2x8x8xf32>
    %56 = arith.mulf %54, %55 : vector<2x8x8xf32>
    %57 = vector.shape_cast %56 : vector<2x8x8xf32> to vector<16x8xf32>
    %c8 = arith.constant 8 : index
    %c0_26 = arith.constant 0 : index
    %58 = vector.load %arg3[%c8, %c0_26] : memref<32x32xf32, #tpu.memory_space<vmem>>, vector<8x32xf32>
    %cst_27 = arith.constant dense<0.000000e+00> : vector<16x32xf32>
    %59 = tpu.matmul %57, %58, %cst_27 {dimension_numbers = #tpu.dot_dimension_numbers<[1], [0], [0], [1], [0, 0, 1, 1], [], []>} : vector<16x8xf32>, vector<8x32xf32>, vector<16x32xf32> -> vector<16x32xf32>
    %60 = arith.addf %35, %59 : vector<16x32xf32>
    %61 = vector.extract_strided_slice %9 {offsets = [0, 0, 16], sizes = [2, 8, 8], strides = [1, 1, 1]} : vector<2x8x96xf32> to vector<2x8x8xf32>
    %62 = vector.extract_strided_slice %9 {offsets = [0, 0, 48], sizes = [2, 8, 8], strides = [1, 1, 1]} : vector<2x8x96xf32> to vector<2x8x8xf32>
    %63 = vector.extract_strided_slice %9 {offsets = [0, 0, 80], sizes = [2, 8, 8], strides = [1, 1, 1]} : vector<2x8x96xf32> to vector<2x8x8xf32>
    "tpu.trace_start"() <{level = 10 : i32, message = "bqd,bkd->bqk"}> : () -> ()
    %cst_28 = arith.constant dense<0.000000e+00> : vector<2x8x8xf32>
    %64 = tpu.matmul %61, %62, %cst_28 {dimension_numbers = #tpu.dot_dimension_numbers<[2], [2], [1], [1], [0, 0, 0, 1, 1, 1], [0], [0]>} : vector<2x8x8xf32>, vector<2x8x8xf32>, vector<2x8x8xf32> -> vector<2x8x8xf32>
    "tpu.trace_stop"() : () -> ()
    %cst_29 = arith.constant 0.353553385 : f32
    %65 = vector.broadcast %cst_29 : f32 to vector<2x8x8xf32>
    %66 = arith.mulf %64, %65 : vector<2x8x8xf32>
    %cst_30 = arith.constant dense<0xFF800000> : vector<2x8xf32>
    %67 = vector.multi_reduction <maximumf>, %66, %cst_30 [2] : vector<2x8x8xf32> to vector<2x8xf32>
    %68 = vector.shape_cast %67 : vector<2x8xf32> to vector<2x8x1xf32>
    %69 = vector.broadcast %68 : vector<2x8x1xf32> to vector<2x8x8xf32>
    %70 = arith.subf %66, %69 : vector<2x8x8xf32>
    %71 = math.exp %70 : vector<2x8x8xf32>
    %cst_31 = arith.constant dense<0.000000e+00> : vector<2x8xf32>
    %72 = vector.multi_reduction <add>, %71, %cst_31 [2] : vector<2x8x8xf32> to vector<2x8xf32>
    %73 = vector.shape_cast %72 : vector<2x8xf32> to vector<2x8x1xf32>
    %74 = tpu.reciprocal %73 {approx = true} : vector<2x8x1xf32> -> vector<2x8x1xf32>
    %75 = arith.mulf %73, %74 : vector<2x8x1xf32>
    %cst_32 = arith.constant 2.000000e+00 : f32
    %76 = vector.broadcast %cst_32 : f32 to vector<2x8x1xf32>
    %77 = arith.subf %76, %75 : vector<2x8x1xf32>
    %78 = arith.mulf %74, %77 : vector<2x8x1xf32>
    "tpu.trace_start"() <{level = 10 : i32, message = "bqk,bkd->bqd"}> : () -> ()
    %cst_33 = arith.constant dense<0.000000e+00> : vector<2x8x8xf32>
    %79 = tpu.matmul %71, %63, %cst_33 {dimension_numbers = #tpu.dot_dimension_numbers<[2], [1], [1], [2], [0, 0, 0, 1, 1, 2], [0], [0]>} : vector<2x8x8xf32>, vector<2x8x8xf32>, vector<2x8x8xf32> -> vector<2x8x8xf32>
    "tpu.trace_stop"() : () -> ()
    %80 = vector.broadcast %78 : vector<2x8x1xf32> to vector<2x8x8xf32>
    %81 = arith.mulf %79, %80 : vector<2x8x8xf32>
    %82 = vector.shape_cast %81 : vector<2x8x8xf32> to vector<16x8xf32>
    %c16 = arith.constant 16 : index
    %c0_34 = arith.constant 0 : index
    %83 = vector.load %arg3[%c16, %c0_34] : memref<32x32xf32, #tpu.memory_space<vmem>>, vector<8x32xf32>
    %cst_35 = arith.constant dense<0.000000e+00> : vector<16x32xf32>
    %84 = tpu.matmul %82, %83, %cst_35 {dimension_numbers = #tpu.dot_dimension_numbers<[1], [0], [0], [1], [0, 0, 1, 1], [], []>} : vector<16x8xf32>, vector<8x32xf32>, vector<16x32xf32> -> vector<16x32xf32>
    %85 = arith.addf %60, %84 : vector<16x32xf32>
    %86 = vector.extract_strided_slice %9 {offsets = [0, 0, 24], sizes = [2, 8, 8], strides = [1, 1, 1]} : vector<2x8x96xf32> to vector<2x8x8xf32>
    %87 = vector.extract_strided_slice %9 {offsets = [0, 0, 56], sizes = [2, 8, 8], strides = [1, 1, 1]} : vector<2x8x96xf32> to vector<2x8x8xf32>
    %88 = vector.extract_strided_slice %9 {offsets = [0, 0, 88], sizes = [2, 8, 8], strides = [1, 1, 1]} : vector<2x8x96xf32> to vector<2x8x8xf32>
    "tpu.trace_start"() <{level = 10 : i32, message = "bqd,bkd->bqk"}> : () -> ()
    %cst_36 = arith.constant dense<0.000000e+00> : vector<2x8x8xf32>
    %89 = tpu.matmul %86, %87, %cst_36 {dimension_numbers = #tpu.dot_dimension_numbers<[2], [2], [1], [1], [0, 0, 0, 1, 1, 1], [0], [0]>} : vector<2x8x8xf32>, vector<2x8x8xf32>, vector<2x8x8xf32> -> vector<2x8x8xf32>
    "tpu.trace_stop"() : () -> ()
    %cst_37 = arith.constant 0.353553385 : f32
    %90 = vector.broadcast %cst_37 : f32 to vector<2x8x8xf32>
    %91 = arith.mulf %89, %90 : vector<2x8x8xf32>
    %cst_38 = arith.constant dense<0xFF800000> : vector<2x8xf32>
    %92 = vector.multi_reduction <maximumf>, %91, %cst_38 [2] : vector<2x8x8xf32> to vector<2x8xf32>
    %93 = vector.shape_cast %92 : vector<2x8xf32> to vector<2x8x1xf32>
    %94 = vector.broadcast %93 : vector<2x8x1xf32> to vector<2x8x8xf32>
    %95 = arith.subf %91, %94 : vector<2x8x8xf32>
    %96 = math.exp %95 : vector<2x8x8xf32>
    %cst_39 = arith.constant dense<0.000000e+00> : vector<2x8xf32>
    %97 = vector.multi_reduction <add>, %96, %cst_39 [2] : vector<2x8x8xf32> to vector<2x8xf32>
    %98 = vector.shape_cast %97 : vector<2x8xf32> to vector<2x8x1xf32>
    %99 = tpu.reciprocal %98 {approx = true} : vector<2x8x1xf32> -> vector<2x8x1xf32>
    %100 = arith.mulf %98, %99 : vector<2x8x1xf32>
    %cst_40 = arith.constant 2.000000e+00 : f32
    %101 = vector.broadcast %cst_40 : f32 to vector<2x8x1xf32>
    %102 = arith.subf %101, %100 : vector<2x8x1xf32>
    %103 = arith.mulf %99, %102 : vector<2x8x1xf32>
    "tpu.trace_start"() <{level = 10 : i32, message = "bqk,bkd->bqd"}> : () -> ()
    %cst_41 = arith.constant dense<0.000000e+00> : vector<2x8x8xf32>
    %104 = tpu.matmul %96, %88, %cst_41 {dimension_numbers = #tpu.dot_dimension_numbers<[2], [1], [1], [2], [0, 0, 0, 1, 1, 2], [0], [0]>} : vector<2x8x8xf32>, vector<2x8x8xf32>, vector<2x8x8xf32> -> vector<2x8x8xf32>
    "tpu.trace_stop"() : () -> ()
    %105 = vector.broadcast %103 : vector<2x8x1xf32> to vector<2x8x8xf32>
    %106 = arith.mulf %104, %105 : vector<2x8x8xf32>
    %107 = vector.shape_cast %106 : vector<2x8x8xf32> to vector<16x8xf32>
    %c24 = arith.constant 24 : index
    %c0_42 = arith.constant 0 : index
    %108 = vector.load %arg3[%c24, %c0_42] : memref<32x32xf32, #tpu.memory_space<vmem>>, vector<8x32xf32>
    %cst_43 = arith.constant dense<0.000000e+00> : vector<16x32xf32>
    %109 = tpu.matmul %107, %108, %cst_43 {dimension_numbers = #tpu.dot_dimension_numbers<[1], [0], [0], [1], [0, 0, 1, 1], [], []>} : vector<16x8xf32>, vector<8x32xf32>, vector<16x32xf32> -> vector<16x32xf32>
    %110 = arith.addf %85, %109 : vector<16x32xf32>
    %111 = arith.addf %6, %110 : vector<16x32xf32>
    %cst_44 = arith.constant dense<0.000000e+00> : vector<16xf32>
    %112 = vector.multi_reduction <add>, %111, %cst_44 [1] : vector<16x32xf32> to vector<16xf32>
    %113 = vector.shape_cast %112 : vector<16xf32> to vector<16x1xf32>
    %cst_45 = arith.constant 3.200000e+01 : f32
    %114 = vector.broadcast %cst_45 : f32 to vector<16x1xf32>
    %115 = arith.divf %113, %114 : vector<16x1xf32>
    %116 = vector.broadcast %115 : vector<16x1xf32> to vector<16x32xf32>
    %117 = arith.subf %111, %116 : vector<16x32xf32>
    %118 = arith.mulf %117, %117 : vector<16x32xf32>
    %cst_46 = arith.constant dense<0.000000e+00> : vector<16xf32>
    %119 = vector.multi_reduction <add>, %118, %cst_46 [1] : vector<16x32xf32> to vector<16xf32>
    %120 = vector.shape_cast %119 : vector<16xf32> to vector<16x1xf32>
    %cst_47 = arith.constant 3.200000e+01 : f32
    %121 = vector.broadcast %cst_47 : f32 to vector<16x1xf32>
    %122 = arith.divf %120, %121 : vector<16x1xf32>
    %123 = vector.broadcast %115 : vector<16x1xf32> to vector<16x32xf32>
    %124 = arith.subf %111, %123 : vector<16x32xf32>
    %cst_48 = arith.constant 9.99999974E-6 : f32
    %125 = vector.broadcast %cst_48 : f32 to vector<16x1xf32>
    %126 = arith.addf %122, %125 : vector<16x1xf32>
    %127 = math.rsqrt %126 : vector<16x1xf32>
    %128 = vector.broadcast %127 : vector<16x1xf32> to vector<16x32xf32>
    %129 = arith.mulf %124, %128 : vector<16x32xf32>
    %130 = vector.broadcast %1 : vector<1x32xf32> to vector<16x32xf32>
    %131 = arith.mulf %129, %130 : vector<16x32xf32>
    %132 = vector.broadcast %2 : vector<1x32xf32> to vector<16x32xf32>
    %133 = arith.addf %131, %132 : vector<16x32xf32>
    %c0_49 = arith.constant 0 : index
    %c0_50 = arith.constant 0 : index
    %134 = vector.load %arg4[%c0_49, %c0_50] : memref<32x128xf32, #tpu.memory_space<vmem>>, vector<32x128xf32>
    %cst_51 = arith.constant dense<0.000000e+00> : vector<16x128xf32>
    %135 = tpu.matmul %133, %134, %cst_51 {dimension_numbers = #tpu.dot_dimension_numbers<[1], [0], [0], [1], [0, 0, 1, 1], [], []>} : vector<16x32xf32>, vector<32x128xf32>, vector<16x128xf32> -> vector<16x128xf32>
    %c0_52 = arith.constant 0 : index
    %c0_53 = arith.constant 0 : index
    %136 = vector.load %arg5[%c0_52, %c0_53] : memref<1x128xf32, #tpu.memory_space<vmem>>, vector<1x128xf32>
    %137 = vector.broadcast %136 : vector<1x128xf32> to vector<16x128xf32>
    %138 = arith.addf %135, %137 : vector<16x128xf32>
    %cst_54 = arith.constant 5.000000e-01 : f32
    %139 = vector.broadcast %cst_54 : f32 to vector<16x128xf32>
    %140 = arith.mulf %139, %138 : vector<16x128xf32>
    %cst_55 = arith.constant 4.471500e-02 : f32
    %141 = vector.broadcast %cst_55 : f32 to vector<16x128xf32>
    %142 = arith.mulf %141, %138 : vector<16x128xf32>
    %143 = arith.mulf %142, %138 : vector<16x128xf32>
    %144 = arith.mulf %143, %138 : vector<16x128xf32>
    %145 = arith.addf %138, %144 : vector<16x128xf32>
    %cst_56 = arith.constant 0.797884583 : f32
    %146 = vector.broadcast %cst_56 : f32 to vector<16x128xf32>
    %147 = arith.mulf %146, %145 : vector<16x128xf32>
    %148 = math.tanh %147 : vector<16x128xf32>
    %cst_57 = arith.constant 1.000000e+00 : f32
    %149 = vector.broadcast %cst_57 : f32 to vector<16x128xf32>
    %150 = arith.addf %149, %148 : vector<16x128xf32>
    %151 = arith.mulf %140, %150 : vector<16x128xf32>
    %c0_58 = arith.constant 0 : index
    %c0_59 = arith.constant 0 : index
    %152 = vector.load %arg6[%c0_58, %c0_59] : memref<128x32xf32, #tpu.memory_space<vmem>>, vector<128x32xf32>
    %cst_60 = arith.constant dense<0.000000e+00> : vector<16x32xf32>
    %153 = tpu.matmul %151, %152, %cst_60 {dimension_numbers = #tpu.dot_dimension_numbers<[1], [0], [0], [1], [0, 0, 1, 1], [], []>} : vector<16x128xf32>, vector<128x32xf32>, vector<16x32xf32> -> vector<16x32xf32>
    %154 = vector.broadcast %0 : vector<1x32xf32> to vector<16x32xf32>
    %155 = arith.addf %153, %154 : vector<16x32xf32>
    %156 = arith.addf %133, %155 : vector<16x32xf32>
    %cst_61 = arith.constant dense<0.000000e+00> : vector<16xf32>
    %157 = vector.multi_reduction <add>, %156, %cst_61 [1] : vector<16x32xf32> to vector<16xf32>
    %158 = vector.shape_cast %157 : vector<16xf32> to vector<16x1xf32>
    %cst_62 = arith.constant 3.200000e+01 : f32
    %159 = vector.broadcast %cst_62 : f32 to vector<16x1xf32>
    %160 = arith.divf %158, %159 : vector<16x1xf32>
    %161 = vector.broadcast %160 : vector<16x1xf32> to vector<16x32xf32>
    %162 = arith.subf %156, %161 : vector<16x32xf32>
    %163 = arith.mulf %162, %162 : vector<16x32xf32>
    %cst_63 = arith.constant dense<0.000000e+00> : vector<16xf32>
    %164 = vector.multi_reduction <add>, %163, %cst_63 [1] : vector<16x32xf32> to vector<16xf32>
    %165 = vector.shape_cast %164 : vector<16xf32> to vector<16x1xf32>
    %cst_64 = arith.constant 3.200000e+01 : f32
    %166 = vector.broadcast %cst_64 : f32 to vector<16x1xf32>
    %167 = arith.divf %165, %166 : vector<16x1xf32>
    %168 = vector.broadcast %160 : vector<16x1xf32> to vector<16x32xf32>
    %169 = arith.subf %156, %168 : vector<16x32xf32>
    %cst_65 = arith.constant 9.99999974E-6 : f32
    %170 = vector.broadcast %cst_65 : f32 to vector<16x1xf32>
    %171 = arith.addf %167, %170 : vector<16x1xf32>
    %172 = math.rsqrt %171 : vector<16x1xf32>
    %173 = vector.broadcast %172 : vector<16x1xf32> to vector<16x32xf32>
    %174 = arith.mulf %169, %173 : vector<16x32xf32>
    %175 = vector.broadcast %3 : vector<1x32xf32> to vector<16x32xf32>
    %176 = arith.mulf %174, %175 : vector<16x32xf32>
    %177 = vector.broadcast %4 : vector<1x32xf32> to vector<16x32xf32>
    %178 = arith.addf %176, %177 : vector<16x32xf32>
    %179 = vector.shape_cast %178 : vector<16x32xf32> to vector<2x8x32xf32>
    %c0_66 = arith.constant 0 : index
    %c0_67 = arith.constant 0 : index
    %c0_68 = arith.constant 0 : index
    %180 = vector.load %arg8[%c0_66, %c0_67, %c0_68] : memref<2x8x32xf32, #tpu.memory_space<vmem>>, vector<2x8x32xf32>
    tpu.vector_store %arg8[%c0_66, %c0_67, %c0_68], %179 {strides = array<i32>} : memref<2x8x32xf32, #tpu.memory_space<vmem>>, vector<2x8x32xf32>,
    return
  }
  func.func @transform_0(%arg0: i32) -> (i32, i32, i32) {
    %c0_i32 = arith.constant 0 : i32
    %c0_i32_0 = arith.constant 0 : i32
    %c0_i32_1 = arith.constant 0 : i32
    return %arg0, %c0_i32, %c0_i32_0 : i32, i32, i32
  }
  func.func @transform_1(%arg0: i32) -> (i32, i32) {
    %c0_i32 = arith.constant 0 : i32
    %c0_i32_0 = arith.constant 0 : i32
    %c0_i32_1 = arith.constant 0 : i32
    return %c0_i32, %c0_i32_0 : i32, i32
  }
  func.func @transform_2(%arg0: i32) -> (i32, i32) {
    %c0_i32 = arith.constant 0 : i32
    %c0_i32_0 = arith.constant 0 : i32
    %c0_i32_1 = arith.constant 0 : i32
    return %c0_i32, %c0_i32_0 : i32, i32
  }
  func.func @transform_3(%arg0: i32) -> (i32, i32) {
    %c0_i32 = arith.constant 0 : i32
    %c0_i32_0 = arith.constant 0 : i32
    %c0_i32_1 = arith.constant 0 : i32
    return %c0_i32, %c0_i32_0 : i32, i32
  }
  func.func @transform_4(%arg0: i32) -> (i32, i32) {
    %c0_i32 = arith.constant 0 : i32
    %c0_i32_0 = arith.constant 0 : i32
    %c0_i32_1 = arith.constant 0 : i32
    return %c0_i32, %c0_i32_0 : i32, i32
  }
  func.func @transform_5(%arg0: i32) -> (i32, i32) {
    %c0_i32 = arith.constant 0 : i32
    %c0_i32_0 = arith.constant 0 : i32
    %c0_i32_1 = arith.constant 0 : i32
    return %c0_i32, %c0_i32_0 : i32, i32
  }
  func.func @transform_6(%arg0: i32) -> (i32, i32) {
    %c0_i32 = arith.constant 0 : i32
    %c0_i32_0 = arith.constant 0 : i32
    %c0_i32_1 = arith.constant 0 : i32
    return %c0_i32, %c0_i32_0 : i32, i32
  }
  func.func @transform_7(%arg0: i32) -> (i32, i32, i32) {
    %c0_i32 = arith.constant 0 : i32
    %c0_i32_0 = arith.constant 0 : i32
    %c0_i32_1 = arith.constant 0 : i32
    return %arg0, %c0_i32, %c0_i32_0 : i32, i32, i32
  }
}

</mosaic_0001>

<llo_original>
// kernel: tpu_custom_call.1
$region0: #{tpu_custom_call.1}
  #allocation0 [shape = 'u32[]', space=smem, size = 0x4, offset = 0x4, fixed_abs, tag = 'smem constant byte address 0x4 - core index']
  #allocation1 [shape = 'u32[72,128]{1,0:T(1,128)}', space=vmem, size = 0x9000, scoped, tag = 'internal scratch']
  %s0 = inlined_call_operand.vmem [shape: f32[2,8,32], index: 0, kind: input, shape index: {}]
  %s1 = inlined_call_operand.vmem [shape: f32[32,96], index: 1, kind: input, shape index: {}]
  %s2 = inlined_call_operand.vmem [shape: f32[32,32], index: 2, kind: input, shape index: {}]
  %s3 = inlined_call_operand.vmem [shape: f32[32,128], index: 3, kind: input, shape index: {}]
  %s4 = inlined_call_operand.vmem [shape: f32[1,128], index: 4, kind: input, shape index: {}]
  %s5 = inlined_call_operand.vmem [shape: f32[128,32], index: 5, kind: input, shape index: {}]
  %s6 = inlined_call_operand.vmem [shape: f32[5,32], index: 6, kind: input, shape index: {}]
  %s7 = inlined_call_operand.hbm [shape: f32[2,8,32], index: 7, kind: output, shape index: {}]
  %s8 = sld [smem:[#allocation0]]
  $region38: #{tpu_custom_call.1} parent=0
    _
  %s10 = ssub.s32 1, %s8
  %s11 = scalar_select 0, %s10, %s8
  $region1: #{tpu_custom_call.1} parent=0
    #allocation2 [shape = 'u8[8192]{0}', space=vmem, size = 0x2000, scoped, tag = 'output window, operand 0, single buffered']
    #allocation3 [shape = 's32[1]{0}', space=sflag, size = 0x4, scoped, tag = 'scoped memory for tpu_custom_call.1']
    %12 = vsyncpa [#allocation3], 0
    // Predicated region
    $region2: #{tpu_custom_call.1} parent=1 // pred_check
      _
    $region3: #{tpu_custom_call.1} parent=1 // pred_check_branch
      %14 = sbr.rel (0) target = $region5
    $region4: #{tpu_custom_call.1} parent=1 // pred_region
      _
    $region5: #{tpu_custom_call.1} parent=1 // pred_fallthru
      _
    // Predicated region
    $region6: #{tpu_custom_call.1} parent=1 // pred_check
      _
    $region7: #{tpu_custom_call.1} parent=1 // pred_check_branch
      %16 = sbr.rel (0) target = $region9
    $region8: #{tpu_custom_call.1} parent=1 // pred_region
      _
    $region9: #{tpu_custom_call.1} parent=1 // pred_fallthru
      _
    // Predicated region
    $region10: #{tpu_custom_call.1} parent=1 // pred_check
      _
    $region11: #{tpu_custom_call.1} parent=1 // pred_check_branch
      %18 = sbr.rel (0) target = $region13
    $region12: #{tpu_custom_call.1} parent=1 // pred_region
      _
    $region13: #{tpu_custom_call.1} parent=1 // pred_fallthru
      _
    // Predicated region
    $region14: #{tpu_custom_call.1} parent=1 // pred_check
      _
    $region15: #{tpu_custom_call.1} parent=1 // pred_check_branch
      %20 = sbr.rel (0) target = $region17
    $region16: #{tpu_custom_call.1} parent=1 // pred_region
      _
    $region17: #{tpu_custom_call.1} parent=1 // pred_fallthru
      _
    // Predicated region
    $region18: #{tpu_custom_call.1} parent=1 // pred_check
      _
    $region19: #{tpu_custom_call.1} parent=1 // pred_check_branch
      %22 = sbr.rel (0) target = $region21
    $region20: #{tpu_custom_call.1} parent=1 // pred_region
      _
    $region21: #{tpu_custom_call.1} parent=1 // pred_fallthru
      _
    // Predicated region
    $region22: #{tpu_custom_call.1} parent=1 // pred_check
      _
    $region23: #{tpu_custom_call.1} parent=1 // pred_check_branch
      %24 = sbr.rel (0) target = $region25
    $region24: #{tpu_custom_call.1} parent=1 // pred_region
      _
    $region25: #{tpu_custom_call.1} parent=1 // pred_fallthru
      _
    // Predicated region
    $region26: #{tpu_custom_call.1} parent=1 // pred_check
      _
    $region27: #{tpu_custom_call.1} parent=1 // pred_check_branch
      %26 = sbr.rel (0) target = $region29
    $region28: #{tpu_custom_call.1} parent=1 // pred_region
      _
    $region29: #{tpu_custom_call.1} parent=1 // pred_fallthru
      _
    %v27 = vld [vmem:[%s6] sm:$0x1]
    %v28 = vld [vmem:[%s6 + $0x1] sm:$0x1]
    %v29 = vld [vmem:[%s6 + $0x2] sm:$0x1]
    %v30 = vld [vmem:[%s6 + $0x3] sm:$0x1]
    %v31 = vld [vmem:[%s6 + $0x4] sm:$0x1]
    %v32 = vld [vmem:[%s0] sm:$0xff]
    %v33 = vld [vmem:[%s0 + $0x8] sm:$0xff]
    %v34 = vld [vmem:[%s1] sm:$0xff]
    %v35 = vld [vmem:[%s1 + $0x8] sm:$0xff]
    %v36 = vld [vmem:[%s1 + $0x10] sm:$0xff]
    %v37 = vld [vmem:[%s1 + $0x18] sm:$0xff]
    %vm38 = vcmask 261120
    %v40 = vsel %vm38, %v32, 0
    %v43 = vsel %vm38, %v33, 0
    %45 = vmatpush.msra.mxu0 0.0
    %46 = vmatpush.msra.mxu0 0.0
    %47 = vmatpush.msra.mxu0 0.0
    %48 = vmatpush.msra.mxu0 0.0
    %49 = vmatpush.msra.mxu0 0.0
    %50 = vmatpush.msra.mxu0 0.0
    %51 = vmatpush.msra.mxu0 0.0
    %52 = vmatpush.msra.mxu0 0.0
    %53 = vmatpush.msra.mxu0 0.0
    %54 = vmatpush.msra.mxu0 0.0
    %55 = vmatpush.msra.mxu0 0.0
    %56 = vmatpush.msra.mxu0 0.0
    %57 = vmatpush.msra.mxu0 %v37
    %58 = vmatpush.msra.mxu0 %v36
    %59 = vmatpush.msra.mxu0 %v35
    %60 = vmatpush.msra.mxu0 %v34
    %61 = vmatmul.f32.gmra.mxu0 %v40
    %v62 = vpop.f32.mrf.mxu0
    %v63 = vadd.f32 0.0, %v62
    %64 = vmatmul.f32.gmra.mxu0 %v43
    %v65 = vpop.f32.mrf.mxu0
    %v66 = vadd.f32 0.0, %v65
    %67 = vdwg.mxu0
    %69 = vrot.lane.b32.xlu0 %v63, 96
    %v70 = vpop.permute.xlu0 %69
    %vm71 = vcmask 64512
    %v72 = vsel %vm71, %v63, 0
    %v74 = vsel %vm71, %v70, 0
    %76 = vmatpush.xpose.msra.mxu0 0.0
    %77 = vmatpush.xpose.msra.mxu0 0.0
    %78 = vmatpush.xpose.msra.mxu0 0.0
    %79 = vmatpush.xpose.msra.mxu0 0.0
    %80 = vmatpush.xpose.msra.mxu0 0.0
    %81 = vmatpush.xpose.msra.mxu0 0.0
    %82 = vmatpush.xpose.msra.mxu0 0.0
    %83 = vmatpush.xpose.msra.mxu0 0.0
    %84 = vmatpush.xpose.msra.mxu0 0.0
    %85 = vmatpush.xpose.msra.mxu0 0.0
    %86 = vmatpush.xpose.msra.mxu0 0.0
    %87 = vmatpush.xpose.msra.mxu0 0.0
    %88 = vmatpush.xpose.msra.mxu0 0.0
    %89 = vmatpush.xpose.msra.mxu0 0.0
    %90 = vmatpush.xpose.msra.mxu0 0.0
    %91 = vmatpush.xpose.msra.mxu0 %v74
    %92 = vmatmul.f32.gmra.mxu0 %v72
    %v93 = vpop.f32.mrf.mxu0
    %v94 = vadd.f32 0.0, %v93
    %95 = vdwg.mxu0
    %97 = vrot.lane.b32.xlu0 %v66, 96
    %v98 = vpop.permute.xlu0 %97
    %v99 = vsel %vm71, %v66, 0
    %v101 = vsel %vm71, %v98, 0
    %103 = vmatpush.xpose.msra.mxu0 0.0
    %104 = vmatpush.xpose.msra.mxu0 0.0
    %105 = vmatpush.xpose.msra.mxu0 0.0
    %106 = vmatpush.xpose.msra.mxu0 0.0
    %107 = vmatpush.xpose.msra.mxu0 0.0
    %108 = vmatpush.xpose.msra.mxu0 0.0
    %109 = vmatpush.xpose.msra.mxu0 0.0
    %110 = vmatpush.xpose.msra.mxu0 0.0
    %111 = vmatpush.xpose.msra.mxu0 0.0
    %112 = vmatpush.xpose.msra.mxu0 0.0
    %113 = vmatpush.xpose.msra.mxu0 0.0
    %114 = vmatpush.xpose.msra.mxu0 0.0
    %115 = vmatpush.xpose.msra.mxu0 0.0
    %116 = vmatpush.xpose.msra.mxu0 0.0
    %117 = vmatpush.xpose.msra.mxu0 0.0
    %118 = vmatpush.xpose.msra.mxu0 %v101
    %119 = vmatmul.f32.gmra.mxu0 %v99
    %v120 = vpop.f32.mrf.mxu0
    %v121 = vadd.f32 0.0, %v120
    %122 = vdwg.mxu0
    %v123 = vmul.f32 %v94, 0.35355338
    %v124 = vmul.f32 %v121, 0.35355338
    %v125 = vsel %vm71, %v123, -inf
    %126 = vmax.xlane.f32.xlu0 %v125
    %v127 = vpop.xlane.xlu0 %126
    %v128 = vsel %vm71, %v124, -inf
    %129 = vmax.xlane.f32.xlu0 %v128
    %v130 = vpop.xlane.xlu0 %129
    %v131 = vsub.f32 %v123, %v127
    %v132 = vsub.f32 %v124, %v130
    %v133 = vmul.f32 %v131, 1.442695
    %v134 = vpow.pop %v133
    %v135 = vmul.f32 %v132, 1.442695
    %v136 = vpow.pop %v135
    %v137 = vsel %vm71, %v134, 0.0
    %138 = vadd.xlane.f32.xlu0 %v137
    %v139 = vpop.xlane.xlu0 %138
    %v140 = vsel %vm71, %v136, 0.0
    %141 = vadd.xlane.f32.xlu0 %v140
    %v142 = vpop.xlane.xlu0 %141
    %v143 = vrcp.pop %v139
    %v144 = vrcp.pop %v142
    %v145 = vmul.f32 %v139, %v143
    %v146 = vmul.f32 %v142, %v144
    %v147 = vsub.f32 2.0, %v145
    %v148 = vsub.f32 2.0, %v146
    %v149 = vmul.f32 %v143, %v147
    %v150 = vmul.f32 %v144, %v148
    %151 = vrot.lane.b32.xlu0 %v63, 64
    %v152 = vpop.permute.xlu0 %151
    %v155 = vsel %vm71, %v134, 0
    %157 = vmatpush.msra.mxu0 0.0
    %158 = vmatpush.msra.mxu0 0.0
    %159 = vmatpush.msra.mxu0 0.0
    %160 = vmatpush.msra.mxu0 0.0
    %161 = vmatpush.msra.mxu0 0.0
    %162 = vmatpush.msra.mxu0 0.0
    %163 = vmatpush.msra.mxu0 0.0
    %164 = vmatpush.msra.mxu0 0.0
    %165 = vmatpush.msra.mxu0 0.0
    %166 = vmatpush.msra.mxu0 0.0
    %167 = vmatpush.msra.mxu0 0.0
    %168 = vmatpush.msra.mxu0 0.0
    %169 = vmatpush.msra.mxu0 0.0
    %170 = vmatpush.msra.mxu0 0.0
    %171 = vmatpush.msra.mxu0 0.0
    %172 = vmatpush.msra.mxu0 %v152
    %173 = vmatmul.f32.gmra.mxu0 %v155
    %v174 = vpop.f32.mrf.mxu0
    %v175 = vadd.f32 0.0, %v174
    %176 = vdwg.mxu0
    %177 = vrot.lane.b32.xlu0 %v66, 64
    %v178 = vpop.permute.xlu0 %177
    %v181 = vsel %vm71, %v136, 0
    %183 = vmatpush.msra.mxu0 0.0
    %184 = vmatpush.msra.mxu0 0.0
    %185 = vmatpush.msra.mxu0 0.0
    %186 = vmatpush.msra.mxu0 0.0
    %187 = vmatpush.msra.mxu0 0.0
    %188 = vmatpush.msra.mxu0 0.0
    %189 = vmatpush.msra.mxu0 0.0
    %190 = vmatpush.msra.mxu0 0.0
    %191 = vmatpush.msra.mxu0 0.0
    %192 = vmatpush.msra.mxu0 0.0
    %193 = vmatpush.msra.mxu0 0.0
    %194 = vmatpush.msra.mxu0 0.0
    %195 = vmatpush.msra.mxu0 0.0
    %196 = vmatpush.msra.mxu0 0.0
    %197 = vmatpush.msra.mxu0 0.0
    %198 = vmatpush.msra.mxu0 %v178
    %199 = vmatmul.f32.gmra.mxu0 %v181
    %v200 = vpop.f32.mrf.mxu0
    %v201 = vadd.f32 0.0, %v200
    %202 = vdwg.mxu0
    %v203 = vmul.f32 %v175, %v149
    %v204 = vmul.f32 %v201, %v150
    %v205 = vld [vmem:[%s2] sm:$0xff]
    %206 = vrot.lane.b32.xlu0 %v63, 120
    %v207 = vpop.permute.xlu0 %206
    %208 = vrot.lane.b32.xlu0 %v63, 88
    %v209 = vpop.permute.xlu0 %208
    %v210 = vsel %vm71, %v207, 0
    %v212 = vsel %vm71, %v209, 0
    %214 = vmatpush.xpose.msra.mxu0 0.0
    %215 = vmatpush.xpose.msra.mxu0 0.0
    %216 = vmatpush.xpose.msra.mxu0 0.0
    %217 = vmatpush.xpose.msra.mxu0 0.0
    %218 = vmatpush.xpose.msra.mxu0 0.0
    %219 = vmatpush.xpose.msra.mxu0 0.0
    %220 = vmatpush.xpose.msra.mxu0 0.0
    %221 = vmatpush.xpose.msra.mxu0 0.0
    %222 = vmatpush.xpose.msra.mxu0 0.0
    %223 = vmatpush.xpose.msra.mxu0 0.0
    %224 = vmatpush.xpose.msra.mxu0 0.0
    %225 = vmatpush.xpose.msra.mxu0 0.0
    %226 = vmatpush.xpose.msra.mxu0 0.0
    %227 = vmatpush.xpose.msra.mxu0 0.0
    %228 = vmatpush.xpose.msra.mxu0 0.0
    %229 = vmatpush.xpose.msra.mxu0 %v212
    %230 = vmatmul.f32.gmra.mxu0 %v210
    %v231 = vpop.f32.mrf.mxu0
    %v232 = vadd.f32 0.0, %v231
    %233 = vdwg.mxu0
    %234 = vrot.lane.b32.xlu0 %v66, 120
    %v235 = vpop.permute.xlu0 %234
    %236 = vrot.lane.b32.xlu0 %v66, 88
    %v237 = vpop.permute.xlu0 %236
    %v238 = vsel %vm71, %v235, 0
    %v240 = vsel %vm71, %v237, 0
    %242 = vmatpush.xpose.msra.mxu0 0.0
    %243 = vmatpush.xpose.msra.mxu0 0.0
    %244 = vmatpush.xpose.msra.mxu0 0.0
    %245 = vmatpush.xpose.msra.mxu0 0.0
    %246 = vmatpush.xpose.msra.mxu0 0.0
    %247 = vmatpush.xpose.msra.mxu0 0.0
    %248 = vmatpush.xpose.msra.mxu0 0.0
    %249 = vmatpush.xpose.msra.mxu0 0.0
    %250 = vmatpush.xpose.msra.mxu0 0.0
    %251 = vmatpush.xpose.msra.mxu0 0.0
    %252 = vmatpush.xpose.msra.mxu0 0.0
    %253 = vmatpush.xpose.msra.mxu0 0.0
    %254 = vmatpush.xpose.msra.mxu0 0.0
    %255 = vmatpush.xpose.msra.mxu0 0.0
    %256 = vmatpush.xpose.msra.mxu0 0.0
    %257 = vmatpush.xpose.msra.mxu0 %v240
    %258 = vmatmul.f32.gmra.mxu0 %v238
    %v259 = vpop.f32.mrf.mxu0
    %v260 = vadd.f32 0.0, %v259
    %261 = vdwg.mxu0
    %v262 = vmul.f32 %v232, 0.35355338
    %v263 = vmul.f32 %v260, 0.35355338
    %v264 = vsel %vm71, %v262, -inf
    %265 = vmax.xlane.f32.xlu0 %v264
    %v266 = vpop.xlane.xlu0 %265
    %v267 = vsel %vm71, %v263, -inf
    %268 = vmax.xlane.f32.xlu0 %v267
    %v269 = vpop.xlane.xlu0 %268
    %v270 = vsub.f32 %v262, %v266
    %v271 = vsub.f32 %v263, %v269
    %v272 = vmul.f32 %v270, 1.442695
    %v273 = vpow.pop %v272
    %v274 = vmul.f32 %v271, 1.442695
    %v275 = vpow.pop %v274
    %v276 = vsel %vm71, %v273, 0.0
    %277 = vadd.xlane.f32.xlu0 %v276
    %v278 = vpop.xlane.xlu0 %277
    %v279 = vsel %vm71, %v275, 0.0
    %280 = vadd.xlane.f32.xlu0 %v279
    %v281 = vpop.xlane.xlu0 %280
    %v282 = vrcp.pop %v278
    %v283 = vrcp.pop %v281
    %v284 = vmul.f32 %v278, %v282
    %v285 = vmul.f32 %v281, %v283
    %v286 = vsub.f32 2.0, %v284
    %v287 = vsub.f32 2.0, %v285
    %v288 = vmul.f32 %v282, %v286
    %v289 = vmul.f32 %v283, %v287
    %290 = vrot.lane.b32.xlu0 %v63, 56
    %v291 = vpop.permute.xlu0 %290
    %v294 = vsel %vm71, %v273, 0
    %296 = vmatpush.msra.mxu0 0.0
    %297 = vmatpush.msra.mxu0 0.0
    %298 = vmatpush.msra.mxu0 0.0
    %299 = vmatpush.msra.mxu0 0.0
    %300 = vmatpush.msra.mxu0 0.0
    %301 = vmatpush.msra.mxu0 0.0
    %302 = vmatpush.msra.mxu0 0.0
    %303 = vmatpush.msra.mxu0 0.0
    %304 = vmatpush.msra.mxu0 0.0
    %305 = vmatpush.msra.mxu0 0.0
    %306 = vmatpush.msra.mxu0 0.0
    %307 = vmatpush.msra.mxu0 0.0
    %308 = vmatpush.msra.mxu0 0.0
    %309 = vmatpush.msra.mxu0 0.0
    %310 = vmatpush.msra.mxu0 0.0
    %311 = vmatpush.msra.mxu0 %v291
    %312 = vmatmul.f32.gmra.mxu0 %v294
    %v313 = vpop.f32.mrf.mxu0
    %v314 = vadd.f32 0.0, %v313
    %315 = vdwg.mxu0
    %316 = vrot.lane.b32.xlu0 %v66, 56
    %v317 = vpop.permute.xlu0 %316
    %v320 = vsel %vm71, %v275, 0
    %322 = vmatpush.msra.mxu0 0.0
    %323 = vmatpush.msra.mxu0 0.0
    %324 = vmatpush.msra.mxu0 0.0
    %325 = vmatpush.msra.mxu0 0.0
    %326 = vmatpush.msra.mxu0 0.0
    %327 = vmatpush.msra.mxu0 0.0
    %328 = vmatpush.msra.mxu0 0.0
    %329 = vmatpush.msra.mxu0 0.0
    %330 = vmatpush.msra.mxu0 0.0
    %331 = vmatpush.msra.mxu0 0.0
    %332 = vmatpush.msra.mxu0 0.0
    %333 = vmatpush.msra.mxu0 0.0
    %334 = vmatpush.msra.mxu0 0.0
    %335 = vmatpush.msra.mxu0 0.0
    %336 = vmatpush.msra.mxu0 0.0
    %337 = vmatpush.msra.mxu0 %v317
    %338 = vmatmul.f32.gmra.mxu0 %v320
    %v339 = vpop.f32.mrf.mxu0
    %v340 = vadd.f32 0.0, %v339
    %341 = vdwg.mxu0
    %v342 = vmul.f32 %v314, %v288
    %v343 = vmul.f32 %v340, %v289
    %v344 = vld [vmem:[%s2 + $0x8] sm:$0xff]
    %v346 = vsel %vm71, %v342, 0
    %v349 = vsel %vm71, %v343, 0
    %351 = vmatpush.msra.mxu0 0.0
    %352 = vmatpush.msra.mxu0 0.0
    %353 = vmatpush.msra.mxu0 0.0
    %354 = vmatpush.msra.mxu0 0.0
    %355 = vmatpush.msra.mxu0 0.0
    %356 = vmatpush.msra.mxu0 0.0
    %357 = vmatpush.msra.mxu0 0.0
    %358 = vmatpush.msra.mxu0 0.0
    %359 = vmatpush.msra.mxu0 0.0
    %360 = vmatpush.msra.mxu0 0.0
    %361 = vmatpush.msra.mxu0 0.0
    %362 = vmatpush.msra.mxu0 0.0
    %363 = vmatpush.msra.mxu0 0.0
    %364 = vmatpush.msra.mxu0 0.0
    %365 = vmatpush.msra.mxu0 0.0
    %366 = vmatpush.msra.mxu0 %v344
    %367 = vmatmul.f32.gmra.mxu0 %v346
    %v368 = vpop.f32.mrf.mxu0
    %v369 = vadd.f32 0.0, %v368
    %370 = vmatmul.f32.gmra.mxu0 %v349
    %v371 = vpop.f32.mrf.mxu0
    %v372 = vadd.f32 0.0, %v371
    %373 = vdwg.mxu0
    %v375 = vsel %vm71, %v203, 0
    %v378 = vsel %vm71, %v204, 0
    %380 = vmatpush.msra.mxu0 0.0
    %381 = vmatpush.msra.mxu0 0.0
    %382 = vmatpush.msra.mxu0 0.0
    %383 = vmatpush.msra.mxu0 0.0
    %384 = vmatpush.msra.mxu0 0.0
    %385 = vmatpush.msra.mxu0 0.0
    %386 = vmatpush.msra.mxu0 0.0
    %387 = vmatpush.msra.mxu0 0.0
    %388 = vmatpush.msra.mxu0 0.0
    %389 = vmatpush.msra.mxu0 0.0
    %390 = vmatpush.msra.mxu0 0.0
    %391 = vmatpush.msra.mxu0 0.0
    %392 = vmatpush.msra.mxu0 0.0
    %393 = vmatpush.msra.mxu0 0.0
    %394 = vmatpush.msra.mxu0 0.0
    %395 = vmatpush.msra.mxu0 %v205
    %396 = vmatmul.f32.gmra.mxu0 %v375
    %v397 = vpop.f32.mrf.mxu0
    %v398 = vadd.f32 %v369, %v397
    %399 = vmatmul.f32.gmra.mxu0 %v378
    %v400 = vpop.f32.mrf.mxu0
    %v401 = vadd.f32 %v372, %v400
    %402 = vdwg.mxu0
    %403 = vrot.lane.b32.xlu0 %v63, 112
    %v404 = vpop.permute.xlu0 %403
    %405 = vrot.lane.b32.xlu0 %v63, 80
    %v406 = vpop.permute.xlu0 %405
    %v407 = vsel %vm71, %v404, 0
    %v409 = vsel %vm71, %v406, 0
    %411 = vmatpush.xpose.msra.mxu0 0.0
    %412 = vmatpush.xpose.msra.mxu0 0.0
    %413 = vmatpush.xpose.msra.mxu0 0.0
    %414 = vmatpush.xpose.msra.mxu0 0.0
    %415 = vmatpush.xpose.msra.mxu0 0.0
    %416 = vmatpush.xpose.msra.mxu0 0.0
    %417 = vmatpush.xpose.msra.mxu0 0.0
    %418 = vmatpush.xpose.msra.mxu0 0.0
    %419 = vmatpush.xpose.msra.mxu0 0.0
    %420 = vmatpush.xpose.msra.mxu0 0.0
    %421 = vmatpush.xpose.msra.mxu0 0.0
    %422 = vmatpush.xpose.msra.mxu0 0.0
    %423 = vmatpush.xpose.msra.mxu0 0.0
    %424 = vmatpush.xpose.msra.mxu0 0.0
    %425 = vmatpush.xpose.msra.mxu0 0.0
    %426 = vmatpush.xpose.msra.mxu0 %v409
    %427 = vmatmul.f32.gmra.mxu0 %v407
    %v428 = vpop.f32.mrf.mxu0
    %v429 = vadd.f32 0.0, %v428
    %430 = vdwg.mxu0
    %431 = vrot.lane.b32.xlu0 %v66, 112
    %v432 = vpop.permute.xlu0 %431
    %433 = vrot.lane.b32.xlu0 %v66, 80
    %v434 = vpop.permute.xlu0 %433
    %v435 = vsel %vm71, %v432, 0
    %v437 = vsel %vm71, %v434, 0
    %439 = vmatpush.xpose.msra.mxu0 0.0
    %440 = vmatpush.xpose.msra.mxu0 0.0
    %441 = vmatpush.xpose.msra.mxu0 0.0
    %442 = vmatpush.xpose.msra.mxu0 0.0
    %443 = vmatpush.xpose.msra.mxu0 0.0
    %444 = vmatpush.xpose.msra.mxu0 0.0
    %445 = vmatpush.xpose.msra.mxu0 0.0
    %446 = vmatpush.xpose.msra.mxu0 0.0
    %447 = vmatpush.xpose.msra.mxu0 0.0
    %448 = vmatpush.xpose.msra.mxu0 0.0
    %449 = vmatpush.xpose.msra.mxu0 0.0
    %450 = vmatpush.xpose.msra.mxu0 0.0
    %451 = vmatpush.xpose.msra.mxu0 0.0
    %452 = vmatpush.xpose.msra.mxu0 0.0
    %453 = vmatpush.xpose.msra.mxu0 0.0
    %454 = vmatpush.xpose.msra.mxu0 %v437
    %455 = vmatmul.f32.gmra.mxu0 %v435
    %v456 = vpop.f32.mrf.mxu0
    %v457 = vadd.f32 0.0, %v456
    %458 = vdwg.mxu0
    %v459 = vmul.f32 %v429, 0.35355338
    %v460 = vmul.f32 %v457, 0.35355338
    %v461 = vsel %vm71, %v459, -inf
    %462 = vmax.xlane.f32.xlu0 %v461
    %v463 = vpop.xlane.xlu0 %462
    %v464 = vsel %vm71, %v460, -inf
    %465 = vmax.xlane.f32.xlu0 %v464
    %v466 = vpop.xlane.xlu0 %465
    %v467 = vsub.f32 %v459, %v463
    %v468 = vsub.f32 %v460, %v466
    %v469 = vmul.f32 %v467, 1.442695
    %v470 = vpow.pop %v469
    %v471 = vmul.f32 %v468, 1.442695
    %v472 = vpow.pop %v471
    %v473 = vsel %vm71, %v470, 0.0
    %474 = vadd.xlane.f32.xlu0 %v473
    %v475 = vpop.xlane.xlu0 %474
    %v476 = vsel %vm71, %v472, 0.0
    %477 = vadd.xlane.f32.xlu0 %v476
    %v478 = vpop.xlane.xlu0 %477
    %v479 = vrcp.pop %v475
    %v480 = vrcp.pop %v478
    %v481 = vmul.f32 %v475, %v479
    %v482 = vmul.f32 %v478, %v480
    %v483 = vsub.f32 2.0, %v481
    %v484 = vsub.f32 2.0, %v482
    %v485 = vmul.f32 %v479, %v483
    %v486 = vmul.f32 %v480, %v484
    %487 = vrot.lane.b32.xlu0 %v63, 48
    %v488 = vpop.permute.xlu0 %487
    %v491 = vsel %vm71, %v470, 0
    %493 = vmatpush.msra.mxu0 0.0
    %494 = vmatpush.msra.mxu0 0.0
    %495 = vmatpush.msra.mxu0 0.0
    %496 = vmatpush.msra.mxu0 0.0
    %497 = vmatpush.msra.mxu0 0.0
    %498 = vmatpush.msra.mxu0 0.0
    %499 = vmatpush.msra.mxu0 0.0
    %500 = vmatpush.msra.mxu0 0.0
    %501 = vmatpush.msra.mxu0 0.0
    %502 = vmatpush.msra.mxu0 0.0
    %503 = vmatpush.msra.mxu0 0.0
    %504 = vmatpush.msra.mxu0 0.0
    %505 = vmatpush.msra.mxu0 0.0
    %506 = vmatpush.msra.mxu0 0.0
    %507 = vmatpush.msra.mxu0 0.0
    %508 = vmatpush.msra.mxu0 %v488
    %509 = vmatmul.f32.gmra.mxu0 %v491
    %v510 = vpop.f32.mrf.mxu0
    %v511 = vadd.f32 0.0, %v510
    %512 = vdwg.mxu0
    %513 = vrot.lane.b32.xlu0 %v66, 48
    %v514 = vpop.permute.xlu0 %513
    %v517 = vsel %vm71, %v472, 0
    %519 = vmatpush.msra.mxu0 0.0
    %520 = vmatpush.msra.mxu0 0.0
    %521 = vmatpush.msra.mxu0 0.0
    %522 = vmatpush.msra.mxu0 0.0
    %523 = vmatpush.msra.mxu0 0.0
    %524 = vmatpush.msra.mxu0 0.0
    %525 = vmatpush.msra.mxu0 0.0
    %526 = vmatpush.msra.mxu0 0.0
    %527 = vmatpush.msra.mxu0 0.0
    %528 = vmatpush.msra.mxu0 0.0
    %529 = vmatpush.msra.mxu0 0.0
    %530 = vmatpush.msra.mxu0 0.0
    %531 = vmatpush.msra.mxu0 0.0
    %532 = vmatpush.msra.mxu0 0.0
    %533 = vmatpush.msra.mxu0 0.0
    %534 = vmatpush.msra.mxu0 %v514
    %535 = vmatmul.f32.gmra.mxu0 %v517
    %v536 = vpop.f32.mrf.mxu0
    %v537 = vadd.f32 0.0, %v536
    %538 = vdwg.mxu0
    %v539 = vmul.f32 %v511, %v485
    %v540 = vmul.f32 %v537, %v486
    %v541 = vld [vmem:[%s2 + $0x10] sm:$0xff]
    %v543 = vsel %vm71, %v539, 0
    %v546 = vsel %vm71, %v540, 0
    %548 = vmatpush.msra.mxu0 0.0
    %549 = vmatpush.msra.mxu0 0.0
    %550 = vmatpush.msra.mxu0 0.0
    %551 = vmatpush.msra.mxu0 0.0
    %552 = vmatpush.msra.mxu0 0.0
    %553 = vmatpush.msra.mxu0 0.0
    %554 = vmatpush.msra.mxu0 0.0
    %555 = vmatpush.msra.mxu0 0.0
    %556 = vmatpush.msra.mxu0 0.0
    %557 = vmatpush.msra.mxu0 0.0
    %558 = vmatpush.msra.mxu0 0.0
    %559 = vmatpush.msra.mxu0 0.0
    %560 = vmatpush.msra.mxu0 0.0
    %561 = vmatpush.msra.mxu0 0.0
    %562 = vmatpush.msra.mxu0 0.0
    %563 = vmatpush.msra.mxu0 %v541
    %564 = vmatmul.f32.gmra.mxu0 %v543
    %v565 = vpop.f32.mrf.mxu0
    %v566 = vadd.f32 0.0, %v565
    %567 = vmatmul.f32.gmra.mxu0 %v546
    %v568 = vpop.f32.mrf.mxu0
    %v569 = vadd.f32 0.0, %v568
    %570 = vdwg.mxu0
    %v571 = vadd.f32 %v398, %v566
    %v572 = vadd.f32 %v401, %v569
    %573 = vrot.lane.b32.xlu0 %v63, 104
    %v574 = vpop.permute.xlu0 %573
    %575 = vrot.lane.b32.xlu0 %v63, 72
    %v576 = vpop.permute.xlu0 %575
    %v577 = vsel %vm71, %v574, 0
    %v579 = vsel %vm71, %v576, 0
    %581 = vmatpush.xpose.msra.mxu0 0.0
    %582 = vmatpush.xpose.msra.mxu0 0.0
    %583 = vmatpush.xpose.msra.mxu0 0.0
    %584 = vmatpush.xpose.msra.mxu0 0.0
    %585 = vmatpush.xpose.msra.mxu0 0.0
    %586 = vmatpush.xpose.msra.mxu0 0.0
    %587 = vmatpush.xpose.msra.mxu0 0.0
    %588 = vmatpush.xpose.msra.mxu0 0.0
    %589 = vmatpush.xpose.msra.mxu0 0.0
    %590 = vmatpush.xpose.msra.mxu0 0.0
    %591 = vmatpush.xpose.msra.mxu0 0.0
    %592 = vmatpush.xpose.msra.mxu0 0.0
    %593 = vmatpush.xpose.msra.mxu0 0.0
    %594 = vmatpush.xpose.msra.mxu0 0.0
    %595 = vmatpush.xpose.msra.mxu0 0.0
    %596 = vmatpush.xpose.msra.mxu0 %v579
    %597 = vmatmul.f32.gmra.mxu0 %v577
    %v598 = vpop.f32.mrf.mxu0
    %v599 = vadd.f32 0.0, %v598
    %600 = vdwg.mxu0
    %601 = vrot.lane.b32.xlu0 %v66, 104
    %v602 = vpop.permute.xlu0 %601
    %603 = vrot.lane.b32.xlu0 %v66, 72
    %v604 = vpop.permute.xlu0 %603
    %v605 = vsel %vm71, %v602, 0
    %v607 = vsel %vm71, %v604, 0
    %609 = vmatpush.xpose.msra.mxu0 0.0
    %610 = vmatpush.xpose.msra.mxu0 0.0
    %611 = vmatpush.xpose.msra.mxu0 0.0
    %612 = vmatpush.xpose.msra.mxu0 0.0
    %613 = vmatpush.xpose.msra.mxu0 0.0
    %614 = vmatpush.xpose.msra.mxu0 0.0
    %615 = vmatpush.xpose.msra.mxu0 0.0
    %616 = vmatpush.xpose.msra.mxu0 0.0
    %617 = vmatpush.xpose.msra.mxu0 0.0
    %618 = vmatpush.xpose.msra.mxu0 0.0
    %619 = vmatpush.xpose.msra.mxu0 0.0
    %620 = vmatpush.xpose.msra.mxu0 0.0
    %621 = vmatpush.xpose.msra.mxu0 0.0
    %622 = vmatpush.xpose.msra.mxu0 0.0
    %623 = vmatpush.xpose.msra.mxu0 0.0
    %624 = vmatpush.xpose.msra.mxu0 %v607
    %625 = vmatmul.f32.gmra.mxu0 %v605
    %v626 = vpop.f32.mrf.mxu0
    %v627 = vadd.f32 0.0, %v626
    %628 = vdwg.mxu0
    %v629 = vmul.f32 %v599, 0.35355338
    %v630 = vmul.f32 %v627, 0.35355338
    %v631 = vsel %vm71, %v629, -inf
    %632 = vmax.xlane.f32.xlu0 %v631
    %v633 = vpop.xlane.xlu0 %632
    %v634 = vsel %vm71, %v630, -inf
    %635 = vmax.xlane.f32.xlu0 %v634
    %v636 = vpop.xlane.xlu0 %635
    %v637 = vsub.f32 %v629, %v633
    %v638 = vsub.f32 %v630, %v636
    %v639 = vmul.f32 %v637, 1.442695
    %v640 = vpow.pop %v639
    %v641 = vmul.f32 %v638, 1.442695
    %v642 = vpow.pop %v641
    %v643 = vsel %vm71, %v640, 0.0
    %644 = vadd.xlane.f32.xlu0 %v643
    %v645 = vpop.xlane.xlu0 %644
    %v646 = vsel %vm71, %v642, 0.0
    %647 = vadd.xlane.f32.xlu0 %v646
    %v648 = vpop.xlane.xlu0 %647
    %v649 = vrcp.pop %v645
    %v650 = vrcp.pop %v648
    %v651 = vmul.f32 %v645, %v649
    %v652 = vmul.f32 %v648, %v650
    %v653 = vsub.f32 2.0, %v651
    %v654 = vsub.f32 2.0, %v652
    %v655 = vmul.f32 %v649, %v653
    %v656 = vmul.f32 %v650, %v654
    %657 = vrot.lane.b32.xlu0 %v63, 40
    %v658 = vpop.permute.xlu0 %657
    %v661 = vsel %vm71, %v640, 0
    %663 = vmatpush.msra.mxu0 0.0
    %664 = vmatpush.msra.mxu0 0.0
    %665 = vmatpush.msra.mxu0 0.0
    %666 = vmatpush.msra.mxu0 0.0
    %667 = vmatpush.msra.mxu0 0.0
    %668 = vmatpush.msra.mxu0 0.0
    %669 = vmatpush.msra.mxu0 0.0
    %670 = vmatpush.msra.mxu0 0.0
    %671 = vmatpush.msra.mxu0 0.0
    %672 = vmatpush.msra.mxu0 0.0
    %673 = vmatpush.msra.mxu0 0.0
    %674 = vmatpush.msra.mxu0 0.0
    %675 = vmatpush.msra.mxu0 0.0
    %676 = vmatpush.msra.mxu0 0.0
    %677 = vmatpush.msra.mxu0 0.0
    %678 = vmatpush.msra.mxu0 %v658
    %679 = vmatmul.f32.gmra.mxu0 %v661
    %v680 = vpop.f32.mrf.mxu0
    %v681 = vadd.f32 0.0, %v680
    %682 = vdwg.mxu0
    %683 = vrot.lane.b32.xlu0 %v66, 40
    %v684 = vpop.permute.xlu0 %683
    %v687 = vsel %vm71, %v642, 0
    %689 = vmatpush.msra.mxu0 0.0
    %690 = vmatpush.msra.mxu0 0.0
    %691 = vmatpush.msra.mxu0 0.0
    %692 = vmatpush.msra.mxu0 0.0
    %693 = vmatpush.msra.mxu0 0.0
    %694 = vmatpush.msra.mxu0 0.0
    %695 = vmatpush.msra.mxu0 0.0
    %696 = vmatpush.msra.mxu0 0.0
    %697 = vmatpush.msra.mxu0 0.0
    %698 = vmatpush.msra.mxu0 0.0
    %699 = vmatpush.msra.mxu0 0.0
    %700 = vmatpush.msra.mxu0 0.0
    %701 = vmatpush.msra.mxu0 0.0
    %702 = vmatpush.msra.mxu0 0.0
    %703 = vmatpush.msra.mxu0 0.0
    %704 = vmatpush.msra.mxu0 %v684
    %705 = vmatmul.f32.gmra.mxu0 %v687
    %v706 = vpop.f32.mrf.mxu0
    %v707 = vadd.f32 0.0, %v706
    %708 = vdwg.mxu0
    %v709 = vmul.f32 %v681, %v655
    %v710 = vmul.f32 %v707, %v656
    %v711 = vld [vmem:[%s2 + $0x18] sm:$0xff]
    %v713 = vsel %vm71, %v709, 0
    %v716 = vsel %vm71, %v710, 0
    %718 = vmatpush.msra.mxu0 0.0
    %719 = vmatpush.msra.mxu0 0.0
    %720 = vmatpush.msra.mxu0 0.0
    %721 = vmatpush.msra.mxu0 0.0
    %722 = vmatpush.msra.mxu0 0.0
    %723 = vmatpush.msra.mxu0 0.0
    %724 = vmatpush.msra.mxu0 0.0
    %725 = vmatpush.msra.mxu0 0.0
    %726 = vmatpush.msra.mxu0 0.0
    %727 = vmatpush.msra.mxu0 0.0
    %728 = vmatpush.msra.mxu0 0.0
    %729 = vmatpush.msra.mxu0 0.0
    %730 = vmatpush.msra.mxu0 0.0
    %731 = vmatpush.msra.mxu0 0.0
    %732 = vmatpush.msra.mxu0 0.0
    %733 = vmatpush.msra.mxu0 %v711
    %734 = vmatmul.f32.gmra.mxu0 %v713
    %v735 = vpop.f32.mrf.mxu0
    %v736 = vadd.f32 0.0, %v735
    %737 = vmatmul.f32.gmra.mxu0 %v716
    %v738 = vpop.f32.mrf.mxu0
    %v739 = vadd.f32 0.0, %v738
    %740 = vdwg.mxu0
    %v741 = vadd.f32 %v571, %v736
    %v742 = vadd.f32 %v572, %v739
    %v743 = vadd.f32 %v32, %v741
    %v744 = vadd.f32 %v33, %v742
    %v745 = vsel %vm38, %v743, 0.0
    %746 = vadd.xlane.f32.xlu0 %v745
    %v747 = vpop.xlane.xlu0 %746
    %v748 = vsel %vm38, %v744, 0.0
    %749 = vadd.xlane.f32.xlu0 %v748
    %v750 = vpop.xlane.xlu0 %749
    %v751 = vrcp.pop 32.0
    %v752 = vmul.f32 32.0, %v751
    %v753 = vsub.f32 1.0, %v752
    %v754 = vmul.f32 %v751, %v753
    %v755 = vadd.f32 %v751, %v754
    %vm756 = vweird.f32 %v751
    %v757 = vsel %vm756, %v751, %v755
    %v758 = vmul.f32 %v747, %v757
    %v759 = vmul.f32 %v750, %v757
    %v760 = vsub.f32 %v743, %v758
    %v761 = vsub.f32 %v744, %v759
    %v762 = vmul.f32 %v760, %v760
    %v763 = vmul.f32 %v761, %v761
    %v764 = vsel %vm38, %v762, 0.0
    %765 = vadd.xlane.f32.xlu0 %v764
    %v766 = vpop.xlane.xlu0 %765
    %v767 = vsel %vm38, %v763, 0.0
    %768 = vadd.xlane.f32.xlu0 %v767
    %v769 = vpop.xlane.xlu0 %768
    %v770 = vmul.f32 %v766, %v757
    %v771 = vmul.f32 %v769, %v757
    %v772 = vadd.f32 %v770, 1e-05
    %v773 = vadd.f32 %v771, 1e-05
    %v774 = vrsqrt.pop %v772
    %v775 = vmul.f32 %v774, %v772
    %v776 = vmul.f32 %v775, %v774
    %v777 = vmul.f32 0.5, %v776
    %v778 = vsub.f32 1.5, %v777
    %v779 = vmul.f32 %v774, %v778
    %vm780 = vweird.f32 %v772
    %vm781 = vweird.f32 %v774
    %vm782 = vmor %vm780, %vm781
    %v783 = vsel %vm782, %v774, %v779
    %v784 = vrsqrt.pop %v773
    %v785 = vmul.f32 %v784, %v773
    %v786 = vmul.f32 %v785, %v784
    %v787 = vmul.f32 0.5, %v786
    %v788 = vsub.f32 1.5, %v787
    %v789 = vmul.f32 %v784, %v788
    %vm790 = vweird.f32 %v773
    %vm791 = vweird.f32 %v784
    %vm792 = vmor %vm790, %vm791
    %v793 = vsel %vm792, %v784, %v789
    %v794 = vmul.f32 %v760, %v783
    %v795 = vmul.f32 %v761, %v793
    %v796 = vperm.slane %v28, 0
    %v797 = vmul.f32 %v794, %v796
    %v798 = vmul.f32 %v795, %v796
    %v799 = vperm.slane %v29, 0
    %v800 = vadd.f32 %v797, %v799
    %v801 = vadd.f32 %v798, %v799
    %v802 = vld [vmem:[%s3] sm:$0xff]
    %v803 = vld [vmem:[%s3 + $0x8] sm:$0xff]
    %v804 = vld [vmem:[%s3 + $0x10] sm:$0xff]
    %v805 = vld [vmem:[%s3 + $0x18] sm:$0xff]
    %v806 = vld [vmem:[%s4] sm:$0x1]
    %v808 = vperm.slane %v806, 0
    %v811 = vsel %vm38, %v800, 0
    %v814 = vsel %vm38, %v801, 0
    %816 = vmatpush.msra.mxu0 0.0
    %817 = vmatpush.msra.mxu0 0.0
    %818 = vmatpush.msra.mxu0 0.0
    %819 = vmatpush.msra.mxu0 0.0
    %820 = vmatpush.msra.mxu0 0.0
    %821 = vmatpush.msra.mxu0 0.0
    %822 = vmatpush.msra.mxu0 0.0
    %823 = vmatpush.msra.mxu0 0.0
    %824 = vmatpush.msra.mxu0 0.0
    %825 = vmatpush.msra.mxu0 0.0
    %826 = vmatpush.msra.mxu0 0.0
    %827 = vmatpush.msra.mxu0 0.0
    %828 = vmatpush.msra.mxu0 %v805
    %829 = vmatpush.msra.mxu0 %v804
    %830 = vmatpush.msra.mxu0 %v803
    %831 = vmatpush.msra.mxu0 %v802
    %832 = vmatmul.f32.gmra.mxu0 %v811
    %v833 = vpop.f32.mrf.mxu0
    %v834 = vadd.f32 %v808, %v833
    %835 = vmatmul.f32.gmra.mxu0 %v814
    %v836 = vpop.f32.mrf.mxu0
    %v837 = vadd.f32 %v808, %v836
    %838 = vdwg.mxu0
    %v839 = vmul.f32 %v834, 0.5
    %v840 = vmul.f32 %v837, 0.5
    %v841 = vmul.f32 %v834, 0.044715
    %v842 = vmul.f32 %v837, 0.044715
    %v843 = vmul.f32 %v841, %v834
    %v844 = vmul.f32 %v842, %v837
    %v845 = vmul.f32 %v843, %v834
    %v846 = vmul.f32 %v844, %v837
    %v847 = vadd.f32 %v834, %v845
    %v848 = vadd.f32 %v837, %v846
    %v849 = vmul.f32 %v847, 0.7978846
    %v850 = vmul.f32 %v848, 0.7978846
    %v851 = vtanh.pop %v849
    %v852 = vtanh.pop %v850
    %v853 = vadd.f32 %v851, 1.0
    %v854 = vadd.f32 %v852, 1.0
    %v855 = vmul.f32 %v839, %v853
    %v856 = vmul.f32 %v840, %v854
    %v857 = vld [vmem:[%s5] sm:$0xff]
    %v858 = vld [vmem:[%s5 + $0x8] sm:$0xff]
    %v859 = vld [vmem:[%s5 + $0x10] sm:$0xff]
    %v860 = vld [vmem:[%s5 + $0x18] sm:$0xff]
    %v861 = vld [vmem:[%s5 + $0x20] sm:$0xff]
    %v862 = vld [vmem:[%s5 + $0x28] sm:$0xff]
    %v863 = vld [vmem:[%s5 + $0x30] sm:$0xff]
    %v864 = vld [vmem:[%s5 + $0x38] sm:$0xff]
    %v865 = vld [vmem:[%s5 + $0x40] sm:$0xff]
    %v866 = vld [vmem:[%s5 + $0x48] sm:$0xff]
    %v867 = vld [vmem:[%s5 + $0x50] sm:$0xff]
    %v868 = vld [vmem:[%s5 + $0x58] sm:$0xff]
    %v869 = vld [vmem:[%s5 + $0x60] sm:$0xff]
    %v870 = vld [vmem:[%s5 + $0x68] sm:$0xff]
    %v871 = vld [vmem:[%s5 + $0x70] sm:$0xff]
    %v872 = vld [vmem:[%s5 + $0x78] sm:$0xff]
    %v873 = vperm.slane %v27, 0
    %874 = vmatpush.msra.mxu0 %v872
    %875 = vmatpush.msra.mxu0 %v871
    %876 = vmatpush.msra.mxu0 %v870
    %877 = vmatpush.msra.mxu0 %v869
    %878 = vmatpush.msra.mxu0 %v868
    %879 = vmatpush.msra.mxu0 %v867
    %880 = vmatpush.msra.mxu0 %v866
    %881 = vmatpush.msra.mxu0 %v865
    %882 = vmatpush.msra.mxu0 %v864
    %883 = vmatpush.msra.mxu0 %v863
    %884 = vmatpush.msra.mxu0 %v862
    %885 = vmatpush.msra.mxu0 %v861
    %886 = vmatpush.msra.mxu0 %v860
    %887 = vmatpush.msra.mxu0 %v859
    %888 = vmatpush.msra.mxu0 %v858
    %889 = vmatpush.msra.mxu0 %v857
    %890 = vmatmul.f32.gmra.mxu0 %v855
    %v891 = vpop.f32.mrf.mxu0
    %v892 = vadd.f32 %v873, %v891
    %893 = vmatmul.f32.gmra.mxu0 %v856
    %v894 = vpop.f32.mrf.mxu0
    %v895 = vadd.f32 %v873, %v894
    %896 = vdwg.mxu0
    %v897 = vadd.f32 %v800, %v892
    %v898 = vadd.f32 %v801, %v895
    %v899 = vsel %vm38, %v897, 0.0
    %900 = vadd.xlane.f32.xlu0 %v899
    %v901 = vpop.xlane.xlu0 %900
    %v902 = vsel %vm38, %v898, 0.0
    %903 = vadd.xlane.f32.xlu0 %v902
    %v904 = vpop.xlane.xlu0 %903
    %v905 = vmul.f32 %v901, %v757
    %v906 = vmul.f32 %v904, %v757
    %v907 = vsub.f32 %v897, %v905
    %v908 = vsub.f32 %v898, %v906
    %v909 = vmul.f32 %v907, %v907
    %v910 = vmul.f32 %v908, %v908
    %v911 = vsel %vm38, %v909, 0.0
    %912 = vadd.xlane.f32.xlu0 %v911
    %v913 = vpop.xlane.xlu0 %912
    %v914 = vsel %vm38, %v910, 0.0
    %915 = vadd.xlane.f32.xlu0 %v914
    %v916 = vpop.xlane.xlu0 %915
    %v917 = vmul.f32 %v913, %v757
    %v918 = vmul.f32 %v916, %v757
    %v919 = vadd.f32 %v917, 1e-05
    %v920 = vadd.f32 %v918, 1e-05
    %v921 = vrsqrt.pop %v919
    %v922 = vmul.f32 %v921, %v919
    %v923 = vmul.f32 %v922, %v921
    %v924 = vmul.f32 0.5, %v923
    %v925 = vsub.f32 1.5, %v924
    %v926 = vmul.f32 %v921, %v925
    %vm927 = vweird.f32 %v919
    %vm928 = vweird.f32 %v921
    %vm929 = vmor %vm927, %vm928
    %v930 = vsel %vm929, %v921, %v926
    %v931 = vrsqrt.pop %v920
    %v932 = vmul.f32 %v931, %v920
    %v933 = vmul.f32 %v932, %v931
    %v934 = vmul.f32 0.5, %v933
    %v935 = vsub.f32 1.5, %v934
    %v936 = vmul.f32 %v931, %v935
    %vm937 = vweird.f32 %v920
    %vm938 = vweird.f32 %v931
    %vm939 = vmor %vm937, %vm938
    %v940 = vsel %vm939, %v931, %v936
    %v941 = vmul.f32 %v907, %v930
    %v942 = vmul.f32 %v908, %v940
    %v943 = vperm.slane %v30, 0
    %v944 = vmul.f32 %v941, %v943
    %v945 = vmul.f32 %v942, %v943
    %v946 = vperm.slane %v31, 0
    %v947 = vadd.f32 %v944, %v946
    %v948 = vadd.f32 %v945, %v946
    %949 = vst.msk [vmem:[#allocation2] sm:$0xff] %vm38, %v947
    %950 = vst.msk [vmem:[#allocation2 + $0x8] sm:$0xff] %vm38, %v948
    // Predicated region
    $region30: #{tpu_custom_call.1} parent=1 // pred_check
      _
    $region31: #{tpu_custom_call.1} parent=1 // pred_check_branch
      %952 = sbr.rel (0) target = $region33
    $region32: #{tpu_custom_call.1} parent=1 // pred_region
      %954 = vsyncadd [#allocation3], 0
      %s955 = sshll.u32 [#allocation2], 4
      %s956 = int_to_ptr.vmem [resolvable:$true] %s955
      %s957 = sshll.u32 %s7, 4
      %s958 = int_to_ptr.hbm [resolvable:$true] %s957
      %963 = dma.vmem_to_hbm [thread:$0]  %s956, 256, %s958, [#allocation3], 128, 128, 8
    $region33: #{tpu_custom_call.1} parent=1 // pred_fallthru
      _
    // Predicated region
    $region34: #{tpu_custom_call.1} parent=1 // pred_check
      _
    $region35: #{tpu_custom_call.1} parent=1 // pred_check_branch
      %965 = sbr.rel (0) target = $region37
    $region36: #{tpu_custom_call.1} parent=1 // pred_region
      %967 = dma.done [#allocation3], 256
    $region37: #{tpu_custom_call.1} parent=1 // pred_fallthru
      _
    %968 = vsyncpa [#allocation3], 1

</llo_original>
